<compile_context>
chip_gen: v7x
topology: tpu7x:2x2x1
jax: 0.10.0
libtpu: 0.0.40
codegen_flags: <defaults>
</compile_context>

<pallas_src>
import functools

import jax
import jax.numpy as jnp
from jax import lax
from jax.experimental import pallas as pl
from jax.experimental.pallas import tpu as pltpu


def _round_up(a: int, m: int) -> int:
    return ((a + m - 1) // m) * m


def _compute_dtype():
    # bf16 on bf16-native chips (v6e / v7x); f32 elsewhere (v5e has no bf16
    # VPU) and on non-TPU / interpret backends.
    try:
        dev = jax.devices()[0]
        kind = (getattr(dev, "device_kind", "") or "").lower()
        if getattr(dev, "platform", "") == "tpu" and ("v6" in kind or "v7" in kind):
            return jnp.bfloat16
    except Exception:
        pass
    return jnp.float32


def _sepconv_kernel(x_ref, w_ref, o_ref, *, Wp, KH, KW, L_pad):
    # x_ref : (1, NB*C, S_pad)   packed, padded, spatially-flattened input
    # w_ref : (NB*O, T*NB*C)     fused depthwise+pointwise weights (block-diag)
    # o_ref : (1, NB*O, L_pad)   lane-dense flat output (padded-row coords)
    xs = x_ref[0]                                   # (NB*C, S_pad), one load

    # Stack the KH*KW tap windows along the sublane axis.  Every window is a
    # static slice fully inside the zero-padded slab, and L_pad is a multiple
    # of 128 so stores stay unmasked.
    # TODO(synk): replace the unaligned lane-offset slices with pltpu.roll
    # shifts (idle XLU slot) once validated on hardware.
    windows = []
    for kh in range(KH):
        for kw in range(KW):
            s = kh * Wp + kw                        # static lane offset of this tap
            windows.append(xs[:, s:s + L_pad])      # (NB*C, L_pad)
    slab = jnp.concatenate(windows, axis=0)         # (T*NB*C, L_pad)

    # Fused depthwise + pointwise: one MXU matmul, f32 accumulation.
    out = jnp.dot(w_ref[...], slab, preferred_element_type=jnp.float32)
    o_ref[0] = out.astype(o_ref.dtype)


def separable_conv2d(x, w_depth, w_point, padding):
    """x: (N, C, H, W); w_depth: (C, 1, KH, KW); w_point: (O, C, 1, 1)."""
    N, C, H, W = x.shape
    KH, KW = int(w_depth.shape[2]), int(w_depth.shape[3])
    O = int(w_point.shape[0])
    T = KH * KW

    Ho = H + 2 * padding - KH + 1
    Wo = W + 2 * padding - KW + 1
    Hp = H + 2 * padding
    Wp = W + 2 * padding
    S = Hp * Wp                          # flat padded input length (real data)
    L = Ho * Wp                          # flat output length (padded-row coords)
    L_pad = _round_up(L, 128)            # lane-dense output width
    max_off = (KH - 1) * Wp + (KW - 1)   # largest depthwise tap lane offset
    S_pad = _round_up(max(S, max_off + L_pad), 128)

    # Pack batch elements onto sublanes so the (8,128) vregs are full.
    NB = max(1, min(N, 8 // max(C, 1)))
    G = (N + NB - 1) // NB               # grid steps (batch groups)
    N_pad = G * NB

    cdt = _compute_dtype()
    out_dtype = x.dtype

    # Wrapper-side layout plumbing (pad + reshape; XLA fuses these).
    # TODO(synk): fold the zero-pad into the kernel (zero-init VMEM scratch +
    # per-row DMA) or use allow_input_fusion to drop this extra HBM pass.
    x_pad = jnp.pad(
        x, ((0, N_pad - N), (0, 0), (padding, padding), (padding, padding)))
    x_flat = x_pad.reshape(N_pad, C, S)
    x_flat = jnp.pad(x_flat, ((0, 0), (0, 0), (0, S_pad - S)))
    x_blocks = x_flat.reshape(G, NB * C, S_pad).astype(cdt)

    # Fused weights: W_comb[(b,o), (t, b', c)] = wp[o,c] * wd[c,t] * [b == b'].
    wd = w_depth.reshape(C, T).astype(jnp.float32)       # tap t = kh*KW + kw
    wp = w_point.reshape(O, C).astype(jnp.float32)
    wcomb = wp[:, :, None] * wd[None, :, :]              # (O, C, T)
    eye = jnp.eye(NB, dtype=jnp.float32)
    w5 = jnp.einsum("bp,oct->botpc", eye, wcomb)         # (NB, O, T, NB, C)
    w_comb = w5.reshape(NB * O, T * NB * C).astype(cdt)

    kernel = functools.partial(_sepconv_kernel, Wp=Wp, KH=KH, KW=KW, L_pad=L_pad)

    # TODO(synk): for large H*W add a spatial row-tile grid axis (halo rows via
    # pl.Element) so double-buffered blocks fit the v7x 64 MiB VMEM budget and
    # the grid keeps >= 2 parallel steps (v7x has 2 TensorCores) even when
    # batch packing collapses the batch grid to 1.
    out_blocks = pl.pallas_call(
        kernel,
        out_shape=jax.ShapeDtypeStruct((G, NB * O, L_pad), out_dtype),
        grid_spec=pltpu.PrefetchScalarGridSpec(
            num_scalar_prefetch=0,
            grid=(G,),
            in_specs=[
                pl.BlockSpec((1, NB * C, S_pad), lambda g: (g, 0, 0)),
                pl.BlockSpec((NB * O, T * NB * C), lambda g: (0, 0)),  # constant -> DMA'd once
            ],
            out_specs=pl.BlockSpec((1, NB * O, L_pad), lambda g: (g, 0, 0)),
        ),
        compiler_params=pltpu.CompilerParams(
            dimension_semantics=("parallel",)),
    )(x_blocks, w_comb)

    # Un-pack batch and crop padded-row coordinates back to (N, O, Ho, Wo).
    out = out_blocks.reshape(N_pad, O, L_pad)[:N, :, :L]
    out = out.reshape(N, O, Ho, Wp)[:, :, :, :Wo]
    return out


def _reference(x, w_depth, w_point, padding):
    # Pure-JAX reference for correctness check (NCHW, like PyTorch).
    C = x.shape[1]
    dw = lax.conv_general_dilated(
        x, w_depth,
        window_strides=(1, 1),
        padding=((padding, padding), (padding, padding)),
        dimension_numbers=("NCHW", "OIHW", "NCHW"),
        feature_group_count=C)
    pw = lax.conv_general_dilated(
        dw, w_point,
        window_strides=(1, 1),
        padding="VALID",
        dimension_numbers=("NCHW", "OIHW", "NCHW"))
    return pw


if __name__ == "__main__":
    # Small shapes consistent with the module's forward (NCHW).
    N, C_in, H, W = 2, 4, 16, 16
    C_out = 8
    K = 3
    PAD = 1

    key = jax.random.PRNGKey(0)
    kx, kd, kp = jax.random.split(key, 3)

    x = jax.random.normal(kx, (N, C_in, H, W), dtype=jnp.float32)
    # Depthwise weight: (in_channels, 1, KH, KW); pointwise: (out, in, 1, 1).
    w_depth = jax.random.normal(kd, (C_in, 1, K, K), dtype=jnp.float32) * 0.1
    w_point = jax.random.normal(kp, (C_out, C_in, 1, 1), dtype=jnp.float32) * 0.1

    out = separable_conv2d(x, w_depth, w_point, PAD)
    out = jax.block_until_ready(out)

    ref = _reference(x, w_depth, w_point, PAD)
    if _compute_dtype() == jnp.bfloat16:
        atol, rtol = 5e-3, 2e-2   # bf16 inputs, f32 accumulation
    else:
        atol, rtol = 1e-4, 1e-4
    if not jnp.allclose(out, ref, atol=atol, rtol=rtol):
        raise AssertionError("Pallas SeparableConv2d mismatch vs reference")

    print("KERNEL_OK")
</pallas_src>

<mosaic_0001>
module attributes {stable_mosaic.version = 11 : i64} {
  func.func @_sepconv_kernel(%arg0: i32, %arg1: memref<1x8x512xf32, #tpu.memory_space<vmem>>, %arg2: memref<16x72xf32, #tpu.memory_space<vmem>>, %arg3: memref<1x16x384xf32, #tpu.memory_space<vmem>>) attributes {dimension_semantics = [#tpu.dimension_semantics<parallel>], iteration_bounds = array<i64: 1>, scalar_prefetch = 0 : i64, scratch_operands = 0 : i64, tpu.core_type = #tpu.core_type<tc>, window_params = [{transform_indices = @transform_0, window_bounds = array<i64: 1, 8, 512>}, {pipeline_mode = #tpu.pipeline_mode<synchronous>, transform_indices = @transform_1, window_bounds = array<i64: 16, 72>}, {transform_indices = @transform_2, window_bounds = array<i64: 1, 16, 384>}]} {
    %c0 = arith.constant 0 : index
    %c0_0 = arith.constant 0 : index
    %c0_1 = arith.constant 0 : index
    %0 = vector.load %arg1[%c0, %c0_0, %c0_1] : memref<1x8x512xf32, #tpu.memory_space<vmem>>, vector<1x8x512xf32>
    %1 = vector.shape_cast %0 : vector<1x8x512xf32> to vector<8x512xf32>
    %2 = vector.extract_strided_slice %1 {offsets = [0, 0], sizes = [8, 384], strides = [1, 1]} : vector<8x512xf32> to vector<8x384xf32>
    %3 = vector.extract_strided_slice %1 {offsets = [0, 1], sizes = [8, 384], strides = [1, 1]} : vector<8x512xf32> to vector<8x384xf32>
    %4 = vector.extract_strided_slice %1 {offsets = [0, 2], sizes = [8, 384], strides = [1, 1]} : vector<8x512xf32> to vector<8x384xf32>
    %5 = vector.extract_strided_slice %1 {offsets = [0, 18], sizes = [8, 384], strides = [1, 1]} : vector<8x512xf32> to vector<8x384xf32>
    %6 = vector.extract_strided_slice %1 {offsets = [0, 19], sizes = [8, 384], strides = [1, 1]} : vector<8x512xf32> to vector<8x384xf32>
    %7 = vector.extract_strided_slice %1 {offsets = [0, 20], sizes = [8, 384], strides = [1, 1]} : vector<8x512xf32> to vector<8x384xf32>
    %8 = vector.extract_strided_slice %1 {offsets = [0, 36], sizes = [8, 384], strides = [1, 1]} : vector<8x512xf32> to vector<8x384xf32>
    %9 = vector.extract_strided_slice %1 {offsets = [0, 37], sizes = [8, 384], strides = [1, 1]} : vector<8x512xf32> to vector<8x384xf32>
    %10 = vector.extract_strided_slice %1 {offsets = [0, 38], sizes = [8, 384], strides = [1, 1]} : vector<8x512xf32> to vector<8x384xf32>
    %11 = tpu.concatenate %2, %3, %4, %5, %6, %7, %8, %9, %10 in 0 : vector<8x384xf32>, vector<8x384xf32>, vector<8x384xf32>, vector<8x384xf32>, vector<8x384xf32>, vector<8x384xf32>, vector<8x384xf32>, vector<8x384xf32>, vector<8x384xf32> -> vector<72x384xf32>
    %c0_2 = arith.constant 0 : index
    %c0_3 = arith.constant 0 : index
    %12 = vector.load %arg2[%c0_2, %c0_3] : memref<16x72xf32, #tpu.memory_space<vmem>>, vector<16x72xf32>
    %cst = arith.constant dense<0.000000e+00> : vector<16x384xf32>
    %13 = tpu.matmul %12, %11, %cst {dimension_numbers = #tpu.dot_dimension_numbers<[1], [0], [0], [1], [0, 0, 1, 1], [], []>} : vector<16x72xf32>, vector<72x384xf32>, vector<16x384xf32> -> vector<16x384xf32>
    %c0_4 = arith.constant 0 : index
    %c0_5 = arith.constant 0 : index
    %c0_6 = arith.constant 0 : index
    %14 = vector.load %arg3[%c0_4, %c0_5, %c0_6] : memref<1x16x384xf32, #tpu.memory_space<vmem>>, vector<1x16x384xf32>
    %15 = vector.shape_cast %14 : vector<1x16x384xf32> to vector<16x384xf32>
    %16 = vector.shape_cast %13 : vector<16x384xf32> to vector<1x16x384xf32>
    tpu.vector_store %arg3[%c0_4, %c0_5, %c0_6], %16 {strides = array<i32>} : memref<1x16x384xf32, #tpu.memory_space<vmem>>, vector<1x16x384xf32>,
    return
  }
  func.func @transform_0(%arg0: i32) -> (i32, i32, i32) {
    %c0_i32 = arith.constant 0 : i32
    %c0_i32_0 = arith.constant 0 : i32
    %c0_i32_1 = arith.constant 0 : i32
    return %arg0, %c0_i32, %c0_i32_0 : i32, i32, i32
  }
  func.func @transform_1(%arg0: i32) -> (i32, i32) {
    %c0_i32 = arith.constant 0 : i32
    %c0_i32_0 = arith.constant 0 : i32
    %c0_i32_1 = arith.constant 0 : i32
    return %c0_i32, %c0_i32_0 : i32, i32
  }
  func.func @transform_2(%arg0: i32) -> (i32, i32, i32) {
    %c0_i32 = arith.constant 0 : i32
    %c0_i32_0 = arith.constant 0 : i32
    %c0_i32_1 = arith.constant 0 : i32
    return %arg0, %c0_i32, %c0_i32_0 : i32, i32, i32
  }
}

</mosaic_0001>

<llo_original>
// kernel: tpu_custom_call.1
$region0: #{tpu_custom_call.1}
  #allocation0 [shape = 'u32[]', space=smem, size = 0x4, offset = 0x4, fixed_abs, tag = 'smem constant byte address 0x4 - core index']
  #allocation1 [shape = 'u32[144,128]{1,0:T(1,128)}', space=vmem, size = 0x12000, scoped, tag = 'internal scratch']
  %s0 = inlined_call_operand.hbm [shape: f32[1,8,512], index: 0, kind: input, shape index: {}]
  %s1 = inlined_call_operand.hbm [shape: f32[16,72], index: 1, kind: input, shape index: {}]
  %s2 = inlined_call_operand.hbm [shape: f32[1,16,384], index: 2, kind: output, shape index: {}]
  %s3 = sld [smem:[#allocation0]]
  $region26: #{tpu_custom_call.1} parent=0
    _
  %s5 = ssub.s32 1, %s3
  %s6 = scalar_select 0, %s5, %s3
  $region1: #{tpu_custom_call.1} parent=0
    #allocation2 [shape = 'u8[16384]{0}', space=vmem, size = 0x4000, scoped, tag = 'input window, operand 0, single buffered']
    #allocation3 [shape = 's32[1]{0}', space=sflag, size = 0x4, scoped, tag = 'scoped memory for tpu_custom_call.1']
    #allocation4 [shape = 's32[1]{0}', space=sflag, size = 0x4, scoped, tag = 'scoped memory for tpu_custom_call.1']
    #allocation5 [shape = 'u8[8192]{0}', space=vmem, size = 0x2000, scoped, tag = 'input window, operand 1, single buffered']
    #allocation6 [shape = 's32[1]{0}', space=sflag, size = 0x4, scoped, tag = 'scoped memory for tpu_custom_call.1']
    #allocation7 [shape = 'u8[24576]{0}', space=vmem, size = 0x6000, scoped, tag = 'output window, operand 0, single buffered']
    %7 = vsyncpa [#allocation3], 0
    %8 = vsyncpa [#allocation6], 0
    %9 = vsyncpa [#allocation4], 0
    // Predicated region
    $region2: #{tpu_custom_call.1} parent=1 // pred_check
      _
    $region3: #{tpu_custom_call.1} parent=1 // pred_check_branch
      %11 = sbr.rel (0) target = $region5
    $region4: #{tpu_custom_call.1} parent=1 // pred_region
      %s13 = ssub.s32 512, 512
      %14 = vsyncadd [#allocation3], %s13
      %s16 = sshll.u32 [#allocation2], 4
      %s17 = int_to_ptr.vmem [resolvable:$true] %s16
      %19 = dma.hbm_to_vmem [thread:$0]  %s0, 512, %s17, [#allocation3]
    $region5: #{tpu_custom_call.1} parent=1 // pred_fallthru
      _
    // Predicated region
    $region6: #{tpu_custom_call.1} parent=1 // pred_check
      _
    $region7: #{tpu_custom_call.1} parent=1 // pred_check_branch
      %21 = sbr.rel (0) target = $region9
    $region8: #{tpu_custom_call.1} parent=1 // pred_region
      %s23 = ssub.s32 256, 256
      %24 = vsyncadd [#allocation6], %s23
      %s25 = sshll.u32 [#allocation5], 4
      %s26 = int_to_ptr.vmem [resolvable:$true] %s25
      %31 = dma.hbm_to_vmem [thread:$0]  %s1, 256, %s26, [#allocation6], 128, 128, 8
    $region9: #{tpu_custom_call.1} parent=1 // pred_fallthru
      _
    // Predicated region
    $region10: #{tpu_custom_call.1} parent=1 // pred_check
      _
    $region11: #{tpu_custom_call.1} parent=1 // pred_check_branch
      %33 = sbr.rel (0) target = $region13
    $region12: #{tpu_custom_call.1} parent=1 // pred_region
      %34 = dma.done [#allocation3], 512
    $region13: #{tpu_custom_call.1} parent=1 // pred_fallthru
      _
    // Predicated region
    $region14: #{tpu_custom_call.1} parent=1 // pred_check
      _
    $region15: #{tpu_custom_call.1} parent=1 // pred_check_branch
      %36 = sbr.rel (0) target = $region17
    $region16: #{tpu_custom_call.1} parent=1 // pred_region
      %37 = dma.done [#allocation6], 256
    $region17: #{tpu_custom_call.1} parent=1 // pred_fallthru
      _
    %v38 = vld [vmem:[#allocation2] sm:$0xff]
    %v39 = vld [vmem:[#allocation2 + $0x8] sm:$0xff]
    %v40 = vld [vmem:[#allocation2 + $0x10] sm:$0xff]
    %v41 = vld [vmem:[#allocation2 + $0x18] sm:$0xff]
    %46 = vrot.lane.b32.xlu0 %v38, 127
    %v47 = vpop.permute.xlu0 %46
    %48 = vrot.lane.b32.xlu0 %v39, 127
    %v49 = vpop.permute.xlu0 %48
    %50 = vrot.lane.b32.xlu0 %v40, 127
    %v51 = vpop.permute.xlu0 %50
    %52 = vrot.lane.b32.xlu0 %v41, 127
    %v53 = vpop.permute.xlu0 %52
    %vm54 = vcmask 1039360
    %v55 = vsel %vm54, %v47, %v49
    %v56 = vsel %vm54, %v49, %v51
    %v57 = vsel %vm54, %v51, %v53
    %61 = vrot.lane.b32.xlu0 %v38, 126
    %v62 = vpop.permute.xlu0 %61
    %63 = vrot.lane.b32.xlu0 %v39, 126
    %v64 = vpop.permute.xlu0 %63
    %65 = vrot.lane.b32.xlu0 %v40, 126
    %v66 = vpop.permute.xlu0 %65
    %67 = vrot.lane.b32.xlu0 %v41, 126
    %v68 = vpop.permute.xlu0 %67
    %vm69 = vcmask 1031168
    %v70 = vsel %vm69, %v62, %v64
    %v71 = vsel %vm69, %v64, %v66
    %v72 = vsel %vm69, %v66, %v68
    %76 = vrot.lane.b32.xlu0 %v38, 110
    %v77 = vpop.permute.xlu0 %76
    %78 = vrot.lane.b32.xlu0 %v39, 110
    %v79 = vpop.permute.xlu0 %78
    %80 = vrot.lane.b32.xlu0 %v40, 110
    %v81 = vpop.permute.xlu0 %80
    %82 = vrot.lane.b32.xlu0 %v41, 110
    %v83 = vpop.permute.xlu0 %82
    %vm84 = vcmask 900096
    %v85 = vsel %vm84, %v77, %v79
    %v86 = vsel %vm84, %v79, %v81
    %v87 = vsel %vm84, %v81, %v83
    %91 = vrot.lane.b32.xlu0 %v38, 109
    %v92 = vpop.permute.xlu0 %91
    %93 = vrot.lane.b32.xlu0 %v39, 109
    %v94 = vpop.permute.xlu0 %93
    %95 = vrot.lane.b32.xlu0 %v40, 109
    %v96 = vpop.permute.xlu0 %95
    %97 = vrot.lane.b32.xlu0 %v41, 109
    %v98 = vpop.permute.xlu0 %97
    %vm99 = vcmask 891904
    %v100 = vsel %vm99, %v92, %v94
    %v101 = vsel %vm99, %v94, %v96
    %v102 = vsel %vm99, %v96, %v98
    %106 = vrot.lane.b32.xlu0 %v38, 108
    %v107 = vpop.permute.xlu0 %106
    %108 = vrot.lane.b32.xlu0 %v39, 108
    %v109 = vpop.permute.xlu0 %108
    %110 = vrot.lane.b32.xlu0 %v40, 108
    %v111 = vpop.permute.xlu0 %110
    %112 = vrot.lane.b32.xlu0 %v41, 108
    %v113 = vpop.permute.xlu0 %112
    %vm114 = vcmask 883712
    %v115 = vsel %vm114, %v107, %v109
    %v116 = vsel %vm114, %v109, %v111
    %v117 = vsel %vm114, %v111, %v113
    %121 = vrot.lane.b32.xlu0 %v38, 92
    %v122 = vpop.permute.xlu0 %121
    %123 = vrot.lane.b32.xlu0 %v39, 92
    %v124 = vpop.permute.xlu0 %123
    %125 = vrot.lane.b32.xlu0 %v40, 92
    %v126 = vpop.permute.xlu0 %125
    %127 = vrot.lane.b32.xlu0 %v41, 92
    %v128 = vpop.permute.xlu0 %127
    %vm129 = vcmask 752640
    %v130 = vsel %vm129, %v122, %v124
    %v131 = vsel %vm129, %v124, %v126
    %v132 = vsel %vm129, %v126, %v128
    %136 = vrot.lane.b32.xlu0 %v38, 91
    %v137 = vpop.permute.xlu0 %136
    %138 = vrot.lane.b32.xlu0 %v39, 91
    %v139 = vpop.permute.xlu0 %138
    %140 = vrot.lane.b32.xlu0 %v40, 91
    %v141 = vpop.permute.xlu0 %140
    %142 = vrot.lane.b32.xlu0 %v41, 91
    %v143 = vpop.permute.xlu0 %142
    %vm144 = vcmask 744448
    %v145 = vsel %vm144, %v137, %v139
    %v146 = vsel %vm144, %v139, %v141
    %v147 = vsel %vm144, %v141, %v143
    %151 = vrot.lane.b32.xlu0 %v38, 90
    %v152 = vpop.permute.xlu0 %151
    %153 = vrot.lane.b32.xlu0 %v39, 90
    %v154 = vpop.permute.xlu0 %153
    %155 = vrot.lane.b32.xlu0 %v40, 90
    %v156 = vpop.permute.xlu0 %155
    %157 = vrot.lane.b32.xlu0 %v41, 90
    %v158 = vpop.permute.xlu0 %157
    %vm159 = vcmask 736256
    %v160 = vsel %vm159, %v152, %v154
    %v161 = vsel %vm159, %v154, %v156
    %v162 = vsel %vm159, %v156, %v158
    %v166 = vld [vmem:[#allocation5] sm:$0xff]
    %v167 = vld [vmem:[#allocation5 + $0x8] sm:$0xff]
    %vm168 = vcmask 588800
    %v170 = vsel %vm168, %v166, 0
    %v173 = vsel %vm168, %v167, 0
    %175 = vmatprep.subr.mxu0 %v39
    %176 = vmatpush1.msra.mxu0 %v38
    %177 = vmatprep.subr.mxu0 %v56
    %178 = vmatpush1.msra.mxu0 %v55
    %179 = vmatprep.subr.mxu0 %v71
    %180 = vmatpush1.msra.mxu0 %v70
    %181 = vmatprep.subr.mxu0 %v86
    %182 = vmatpush1.msra.mxu0 %v85
    %183 = vmatprep.subr.mxu0 %v101
    %184 = vmatpush1.msra.mxu0 %v100
    %185 = vmatprep.subr.mxu0 %v116
    %186 = vmatpush1.msra.mxu0 %v115
    %187 = vmatprep.subr.mxu0 %v131
    %188 = vmatpush1.msra.mxu0 %v130
    %189 = vmatprep.subr.mxu0 %v146
    %190 = vmatpush1.msra.mxu0 %v145
    %191 = vmatprep.subr.mxu0 %v161
    %192 = vmatpush1.msra.mxu0 %v160
    %193 = vmatprep.subr.mxu0 0.0
    %194 = vmatpush1.msra.mxu0 0.0
    %195 = vmatprep.subr.mxu0 0.0
    %196 = vmatpush1.msra.mxu0 0.0
    %197 = vmatprep.subr.mxu0 0.0
    %198 = vmatpush1.msra.mxu0 0.0
    %199 = vmatprep.subr.mxu0 0.0
    %200 = vmatpush1.msra.mxu0 0.0
    %201 = vmatprep.subr.mxu0 0.0
    %202 = vmatpush1.msra.mxu0 0.0
    %203 = vmatprep.subr.mxu0 0.0
    %204 = vmatpush1.msra.mxu0 0.0
    %205 = vmatprep.subr.mxu0 0.0
    %206 = vmatpush1.msra.mxu0 0.0
    %207 = vmatprep.subr.mxu0 0.0
    %208 = vmatpush1.msra.mxu0 0.0
    %209 = vmatprep.subr.mxu0 0.0
    %210 = vmatpush1.msra.mxu0 0.0
    %211 = vmatprep.subr.mxu0 0.0
    %212 = vmatpush1.msra.mxu0 0.0
    %213 = vmatprep.subr.mxu0 0.0
    %214 = vmatpush1.msra.mxu0 0.0
    %215 = vmatprep.subr.mxu0 0.0
    %216 = vmatpush1.msra.mxu0 0.0
    %217 = vmatprep.subr.mxu0 0.0
    %218 = vmatpush1.msra.mxu0 0.0
    %219 = vmatprep.subr.mxu0 0.0
    %220 = vmatpush1.msra.mxu0 0.0
    %221 = vmatprep.subr.mxu0 0.0
    %222 = vmatpush1.msra.mxu0 0.0
    %223 = vmatprep.subr.mxu0 0.0
    %224 = vmatpush1.msra.mxu0 0.0
    %225 = vmatprep.subr.mxu0 0.0
    %226 = vmatpush1.msra.mxu0 0.0
    %227 = vmatprep.subr.mxu0 0.0
    %228 = vmatpush1.msra.mxu0 0.0
    %229 = vmatprep.subr.mxu0 0.0
    %230 = vmatpush1.msra.mxu0 0.0
    %231 = vmatprep.subr.mxu0 0.0
    %232 = vmatpush1.msra.mxu0 0.0
    %233 = vmatprep.subr.mxu0 0.0
    %234 = vmatpush1.msra.mxu0 0.0
    %235 = vmatprep.subr.mxu0 0.0
    %236 = vmatpush1.msra.mxu0 0.0
    %237 = vmatprep.subr.mxu0 0.0
    %238 = vmatpush1.msra.mxu0 0.0
    %239 = vmatprep.mubr.f32.mxu0 0.0
    %240 = vmatmul.mubr.f32.gmra.mrb[0].mxu0 %v170
    %v241 = vpop.f32.mrb[0].mxu0
    %v242 = vadd.f32 0.0, %v241
    %v243 = vpop.f32.mrb[0].mxu0
    %v244 = vadd.f32 0.0, %v243
    %245 = vmatprep.mubr.f32.mxu0 0.0
    %246 = vmatmul.mubr.f32.gmra.mrb[0].mxu0 %v173
    %v247 = vpop.f32.mrb[0].mxu0
    %v248 = vadd.f32 0.0, %v247
    %v249 = vpop.f32.mrb[0].mxu0
    %v250 = vadd.f32 0.0, %v249
    %251 = vdwg.mxu0
    %252 = vmatprep.subr.mxu0 0.0
    %253 = vmatpush1.msra.mxu0 %v40
    %254 = vmatprep.subr.mxu0 0.0
    %255 = vmatpush1.msra.mxu0 %v57
    %256 = vmatprep.subr.mxu0 0.0
    %257 = vmatpush1.msra.mxu0 %v72
    %258 = vmatprep.subr.mxu0 0.0
    %259 = vmatpush1.msra.mxu0 %v87
    %260 = vmatprep.subr.mxu0 0.0
    %261 = vmatpush1.msra.mxu0 %v102
    %262 = vmatprep.subr.mxu0 0.0
    %263 = vmatpush1.msra.mxu0 %v117
    %264 = vmatprep.subr.mxu0 0.0
    %265 = vmatpush1.msra.mxu0 %v132
    %266 = vmatprep.subr.mxu0 0.0
    %267 = vmatpush1.msra.mxu0 %v147
    %268 = vmatprep.subr.mxu0 0.0
    %269 = vmatpush1.msra.mxu0 %v162
    %270 = vmatprep.subr.mxu0 0.0
    %271 = vmatpush1.msra.mxu0 0.0
    %272 = vmatprep.subr.mxu0 0.0
    %273 = vmatpush1.msra.mxu0 0.0
    %274 = vmatprep.subr.mxu0 0.0
    %275 = vmatpush1.msra.mxu0 0.0
    %276 = vmatprep.subr.mxu0 0.0
    %277 = vmatpush1.msra.mxu0 0.0
    %278 = vmatprep.subr.mxu0 0.0
    %279 = vmatpush1.msra.mxu0 0.0
    %280 = vmatprep.subr.mxu0 0.0
    %281 = vmatpush1.msra.mxu0 0.0
    %282 = vmatprep.subr.mxu0 0.0
    %283 = vmatpush1.msra.mxu0 0.0
    %284 = vmatprep.subr.mxu0 0.0
    %285 = vmatpush1.msra.mxu0 0.0
    %286 = vmatprep.subr.mxu0 0.0
    %287 = vmatpush1.msra.mxu0 0.0
    %288 = vmatprep.subr.mxu0 0.0
    %289 = vmatpush1.msra.mxu0 0.0
    %290 = vmatprep.subr.mxu0 0.0
    %291 = vmatpush1.msra.mxu0 0.0
    %292 = vmatprep.subr.mxu0 0.0
    %293 = vmatpush1.msra.mxu0 0.0
    %294 = vmatprep.subr.mxu0 0.0
    %295 = vmatpush1.msra.mxu0 0.0
    %296 = vmatprep.subr.mxu0 0.0
    %297 = vmatpush1.msra.mxu0 0.0
    %298 = vmatprep.subr.mxu0 0.0
    %299 = vmatpush1.msra.mxu0 0.0
    %300 = vmatprep.subr.mxu0 0.0
    %301 = vmatpush1.msra.mxu0 0.0
    %302 = vmatprep.subr.mxu0 0.0
    %303 = vmatpush1.msra.mxu0 0.0
    %304 = vmatprep.subr.mxu0 0.0
    %305 = vmatpush1.msra.mxu0 0.0
    %306 = vmatprep.subr.mxu0 0.0
    %307 = vmatpush1.msra.mxu0 0.0
    %308 = vmatprep.subr.mxu0 0.0
    %309 = vmatpush1.msra.mxu0 0.0
    %310 = vmatprep.subr.mxu0 0.0
    %311 = vmatpush1.msra.mxu0 0.0
    %312 = vmatprep.subr.mxu0 0.0
    %313 = vmatpush1.msra.mxu0 0.0
    %314 = vmatprep.subr.mxu0 0.0
    %315 = vmatpush1.msra.mxu0 0.0
    %316 = vmatprep.mubr.f32.mxu0 0.0
    %317 = vmatmul.mubr.f32.gmra.mrb[0].mxu0 %v170
    %v318 = vpop.f32.mrb[0].mxu0
    %v319 = vadd.f32 0.0, %v318
    %v320 = vpop.f32.mrb[0].mxu0
    %321 = vmatprep.mubr.f32.mxu0 0.0
    %322 = vmatmul.mubr.f32.gmra.mrb[0].mxu0 %v173
    %v323 = vpop.f32.mrb[0].mxu0
    %v324 = vadd.f32 0.0, %v323
    %v325 = vpop.f32.mrb[0].mxu0
    %326 = vdwg.mxu0
    %327 = vst [vmem:[#allocation7] sm:$0xff] %v242
    %328 = vst [vmem:[#allocation7 + $0x8] sm:$0xff] %v244
    %329 = vst [vmem:[#allocation7 + $0x10] sm:$0xff] %v319
    %330 = vst [vmem:[#allocation7 + $0x18] sm:$0xff] %v248
    %331 = vst [vmem:[#allocation7 + $0x20] sm:$0xff] %v250
    %332 = vst [vmem:[#allocation7 + $0x28] sm:$0xff] %v324
    // Predicated region
    $region18: #{tpu_custom_call.1} parent=1 // pred_check
      _
    $region19: #{tpu_custom_call.1} parent=1 // pred_check_branch
      %334 = sbr.rel (0) target = $region21
    $region20: #{tpu_custom_call.1} parent=1 // pred_region
      %s336 = ssub.s32 768, 768
      %337 = vsyncadd [#allocation4], %s336
      %s338 = sshll.u32 [#allocation7], 4
      %s339 = int_to_ptr.vmem [resolvable:$true] %s338
      %344 = dma.vmem_to_hbm [thread:$0]  %s339, 768, %s2, [#allocation4], 384, 384, 24
    $region21: #{tpu_custom_call.1} parent=1 // pred_fallthru
      _
    // Predicated region
    $region22: #{tpu_custom_call.1} parent=1 // pred_check
      _
    $region23: #{tpu_custom_call.1} parent=1 // pred_check_branch
      %346 = sbr.rel (0) target = $region25
    $region24: #{tpu_custom_call.1} parent=1 // pred_region
      %347 = dma.done [#allocation4], 768
    $region25: #{tpu_custom_call.1} parent=1 // pred_fallthru
      _
    %348 = vsyncpa [#allocation3], 1
    %349 = vsyncpa [#allocation6], 1
    %350 = vsyncpa [#allocation4], 1

</llo_original>
